<compile_context>
chip_gen: v7x
topology: tpu7x:2x2x1
jax: 0.10.0
libtpu: 0.0.40
codegen_flags: <defaults>
</compile_context>

<pallas_src>
import functools

import jax
import jax.numpy as jnp
from jax.experimental import pallas as pl
from jax.experimental.pallas import tpu as pltpu


def _xor2_confidence_kernel(x_ref, w1_ref, b1_ref, s1_ref, w2_ref, b2_ref,
                            s2_ref, conf_ref, o_ref, *, activation):
    # linear1: (bn, 2) @ (2, middle) -> (bn, middle)
    h = jnp.dot(x_ref[...], w1_ref[...], preferred_element_type=jnp.float32)
    h = h + b1_ref[...]          # bias broadcast (1, middle)
    h = activation(h)            # activation (ReLU per Model.init kaiming/relu)
    h = h * s1_ref[...]          # StaticScale(middle)

    # linear2: (bn, middle) @ (middle, 2) -> (bn, 2)
    y = jnp.dot(h, w2_ref[...], preferred_element_type=jnp.float32)
    y = y + b2_ref[...]          # bias broadcast (1, 2)
    y = y * s2_ref[...]          # StaticScale applied to the 2-dim output

    c = conf_ref[0]              # learnable scalar confidence (SMEM)
    y = y * (c * c)              # x * torch.square(confidence)

    o_ref[...] = y.astype(o_ref.dtype)


def xor2_confidence_forward(x, w1, b1, s1, w2, b2, s2, conf,
                            *, activation="relu", tile_n=512):
    """Fused forward of Model_Xor2_Confidence.

    x    : (N, 2) float32
    w1   : (2, middle)    (transposed vs. torch's linear1.weight)
    b1   : (1, middle)
    s1   : (1, middle)    StaticScale(middle).weight
    w2   : (middle, 2)    (transposed vs. torch's linear2.weight)
    b2   : (1, 2)
    s2   : (1, 2)         scale applied to the 2-dim output (see TODO below)
    conf : (1,)           Confidence parameter (scalar)
    """
    N, f_in = x.shape
    middle = w1.shape[1]
    f_out = w2.shape[1]

    act_fn = {
        "relu": lambda v: jnp.maximum(v, 0.0),
        "tanh": jnp.tanh,
        "identity": lambda v: v,
    }[activation]

    # Small batch: single full-array block (no grid/pipeline overhead).
    # Large batch: tile_n-row blocks (multiple of 8 sublanes), masked tail.
    if N <= tile_n:
        block_n = N
        grid = (1,)
    else:
        block_n = tile_n
        grid = (pl.cdiv(N, tile_n),)

    const = lambda i: (0, 0)  # resident (non-blocked) small operands

    kernel = functools.partial(_xor2_confidence_kernel, activation=act_fn)

    return pl.pallas_call(
        kernel,
        out_shape=jax.ShapeDtypeStruct((N, f_out), x.dtype),
        grid_spec=pltpu.PrefetchScalarGridSpec(
            num_scalar_prefetch=0,
            grid=grid,
            in_specs=[
                pl.BlockSpec((block_n, f_in), lambda i: (i, 0)),   # x
                pl.BlockSpec((f_in, middle), const),               # w1
                pl.BlockSpec((1, middle), const),                  # b1
                pl.BlockSpec((1, middle), const),                  # s1
                pl.BlockSpec((middle, f_out), const),              # w2
                pl.BlockSpec((1, f_out), const),                   # b2
                pl.BlockSpec((1, f_out), const),                   # s2
                pl.BlockSpec(memory_space=pltpu.MemorySpace.SMEM), # confidence
            ],
            out_specs=pl.BlockSpec((block_n, f_out), lambda i: (i, 0)),
        ),
        compiler_params=pltpu.CompilerParams(
            dimension_semantics=("parallel",),
        ),
    )(x, w1, b1, s1, w2, b2, s2, conf)


if __name__ == "__main__":
    key = jax.random.PRNGKey(0)
    k1, k2, kx = jax.random.split(key, 3)

    middle = 128     # hidden width (lane-aligned)
    N = 512          # batch of XOR-style 2-feature inputs
    f_in, f_out = 2, 2

    x = jax.random.normal(kx, (N, f_in), dtype=jnp.float32)

    # Parameters mirroring Model_Xor2_Confidence.init(): kaiming/xavier-style
    # random weights, zero biases, all-ones StaticScale buffers, confidence=1.
    w1 = jax.random.normal(k1, (f_in, middle), dtype=jnp.float32) * jnp.sqrt(2.0 / f_in)
    b1 = jnp.zeros((1, middle), jnp.float32)
    s1 = jnp.ones((1, middle), jnp.float32)
    w2 = jax.random.normal(k2, (middle, f_out), dtype=jnp.float32) * jnp.sqrt(
        2.0 / (middle + f_out))
    b2 = jnp.zeros((1, f_out), jnp.float32)
    # TODO(synk): the reference registers scale2 = StaticScale(middle) but applies it
    # to the (N, 2) output of linear2, which only broadcasts when middle == 2; since
    # the buffer is all ones we apply an all-ones scale over the output features.
    s2 = jnp.ones((1, f_out), jnp.float32)
    conf = jnp.array([1.0], jnp.float32)

    y = jax.block_until_ready(
        xor2_confidence_forward(x, w1, b1, s1, w2, b2, s2, conf, activation="relu"))

    # Pure-JAX reference.
    h_ref = jnp.maximum(x @ w1 + b1, 0.0) * s1
    ref = ((h_ref @ w2 + b2) * s2) * (conf[0] * conf[0])

    assert y.shape == ref.shape and y.dtype == ref.dtype
    assert jnp.allclose(y, ref, atol=1e-5, rtol=1e-5), "mismatch vs JAX reference"

    print("KERNEL_OK")
</pallas_src>

<mosaic_0001>
module attributes {stable_mosaic.version = 11 : i64} {
  func.func @_xor2_confidence_kernel(%arg0: i32, %arg1: memref<512x2xf32, #tpu.memory_space<vmem>>, %arg2: memref<2x128xf32, #tpu.memory_space<vmem>>, %arg3: memref<1x128xf32, #tpu.memory_space<vmem>>, %arg4: memref<1x128xf32, #tpu.memory_space<vmem>>, %arg5: memref<128x2xf32, #tpu.memory_space<vmem>>, %arg6: memref<1x2xf32, #tpu.memory_space<vmem>>, %arg7: memref<1x2xf32, #tpu.memory_space<vmem>>, %arg8: memref<1xf32, #tpu.memory_space<smem>>, %arg9: memref<512x2xf32, #tpu.memory_space<vmem>>) attributes {dimension_semantics = [#tpu.dimension_semantics<parallel>], iteration_bounds = array<i64: 1>, scalar_prefetch = 0 : i64, scratch_operands = 0 : i64, tpu.core_type = #tpu.core_type<tc>, window_params = [{transform_indices = @transform_0, window_bounds = array<i64: 512, 2>}, {pipeline_mode = #tpu.pipeline_mode<synchronous>, transform_indices = @transform_1, window_bounds = array<i64: 2, 128>}, {pipeline_mode = #tpu.pipeline_mode<synchronous>, transform_indices = @transform_2, window_bounds = array<i64: 1, 128>}, {pipeline_mode = #tpu.pipeline_mode<synchronous>, transform_indices = @transform_3, window_bounds = array<i64: 1, 128>}, {pipeline_mode = #tpu.pipeline_mode<synchronous>, transform_indices = @transform_4, window_bounds = array<i64: 128, 2>}, {pipeline_mode = #tpu.pipeline_mode<synchronous>, transform_indices = @transform_5, window_bounds = array<i64: 1, 2>}, {pipeline_mode = #tpu.pipeline_mode<synchronous>, transform_indices = @transform_6, window_bounds = array<i64: 1, 2>}, {transform_indices = @transform_7, window_bounds = array<i64: 1>}, {transform_indices = @transform_8, window_bounds = array<i64: 512, 2>}]} {
    %c0 = arith.constant 0 : index
    %c0_0 = arith.constant 0 : index
    %0 = vector.load %arg1[%c0, %c0_0] : memref<512x2xf32, #tpu.memory_space<vmem>>, vector<512x2xf32>
    %c0_1 = arith.constant 0 : index
    %c0_2 = arith.constant 0 : index
    %1 = vector.load %arg2[%c0_1, %c0_2] : memref<2x128xf32, #tpu.memory_space<vmem>>, vector<2x128xf32>
    %cst = arith.constant dense<0.000000e+00> : vector<512x128xf32>
    %2 = tpu.matmul %0, %1, %cst {dimension_numbers = #tpu.dot_dimension_numbers<[1], [0], [0], [1], [0, 0, 1, 1], [], []>} : vector<512x2xf32>, vector<2x128xf32>, vector<512x128xf32> -> vector<512x128xf32>
    %c0_3 = arith.constant 0 : index
    %c0_4 = arith.constant 0 : index
    %3 = vector.load %arg3[%c0_3, %c0_4] : memref<1x128xf32, #tpu.memory_space<vmem>>, vector<1x128xf32>
    %4 = vector.broadcast %3 : vector<1x128xf32> to vector<512x128xf32>
    %5 = arith.addf %2, %4 : vector<512x128xf32>
    %cst_5 = arith.constant 0.000000e+00 : f32
    %6 = vector.broadcast %cst_5 : f32 to vector<512x128xf32>
    %7 = arith.maximumf %5, %6 : vector<512x128xf32>
    %c0_6 = arith.constant 0 : index
    %c0_7 = arith.constant 0 : index
    %8 = vector.load %arg4[%c0_6, %c0_7] : memref<1x128xf32, #tpu.memory_space<vmem>>, vector<1x128xf32>
    %9 = vector.broadcast %8 : vector<1x128xf32> to vector<512x128xf32>
    %10 = arith.mulf %7, %9 : vector<512x128xf32>
    %c0_8 = arith.constant 0 : index
    %c0_9 = arith.constant 0 : index
    %11 = vector.load %arg5[%c0_8, %c0_9] : memref<128x2xf32, #tpu.memory_space<vmem>>, vector<128x2xf32>
    %cst_10 = arith.constant dense<0.000000e+00> : vector<512x2xf32>
    %12 = tpu.matmul %10, %11, %cst_10 {dimension_numbers = #tpu.dot_dimension_numbers<[1], [0], [0], [1], [0, 0, 1, 1], [], []>} : vector<512x128xf32>, vector<128x2xf32>, vector<512x2xf32> -> vector<512x2xf32>
    %c0_11 = arith.constant 0 : index
    %c0_12 = arith.constant 0 : index
    %13 = vector.load %arg6[%c0_11, %c0_12] : memref<1x2xf32, #tpu.memory_space<vmem>>, vector<1x2xf32>
    %14 = vector.broadcast %13 : vector<1x2xf32> to vector<512x2xf32>
    %15 = arith.addf %12, %14 : vector<512x2xf32>
    %c0_13 = arith.constant 0 : index
    %c0_14 = arith.constant 0 : index
    %16 = vector.load %arg7[%c0_13, %c0_14] : memref<1x2xf32, #tpu.memory_space<vmem>>, vector<1x2xf32>
    %17 = vector.broadcast %16 : vector<1x2xf32> to vector<512x2xf32>
    %18 = arith.mulf %15, %17 : vector<512x2xf32>
    %c0_15 = arith.constant 0 : index
    %19 = memref.load %arg8[%c0_15] : memref<1xf32, #tpu.memory_space<smem>>
    %20 = arith.mulf %19, %19 : f32
    %21 = vector.broadcast %20 : f32 to vector<512x2xf32>
    %22 = arith.mulf %18, %21 : vector<512x2xf32>
    %c0_16 = arith.constant 0 : index
    %c0_17 = arith.constant 0 : index
    %23 = vector.load %arg9[%c0_16, %c0_17] : memref<512x2xf32, #tpu.memory_space<vmem>>, vector<512x2xf32>
    tpu.vector_store %arg9[%c0_16, %c0_17], %22 {strides = array<i32>} : memref<512x2xf32, #tpu.memory_space<vmem>>, vector<512x2xf32>,
    return
  }
  func.func @transform_0(%arg0: i32) -> (i32, i32) {
    %c0_i32 = arith.constant 0 : i32
    %c0_i32_0 = arith.constant 0 : i32
    return %arg0, %c0_i32 : i32, i32
  }
  func.func @transform_1(%arg0: i32) -> (i32, i32) {
    %c0_i32 = arith.constant 0 : i32
    %c0_i32_0 = arith.constant 0 : i32
    %c0_i32_1 = arith.constant 0 : i32
    return %c0_i32, %c0_i32_0 : i32, i32
  }
  func.func @transform_2(%arg0: i32) -> (i32, i32) {
    %c0_i32 = arith.constant 0 : i32
    %c0_i32_0 = arith.constant 0 : i32
    %c0_i32_1 = arith.constant 0 : i32
    return %c0_i32, %c0_i32_0 : i32, i32
  }
  func.func @transform_3(%arg0: i32) -> (i32, i32) {
    %c0_i32 = arith.constant 0 : i32
    %c0_i32_0 = arith.constant 0 : i32
    %c0_i32_1 = arith.constant 0 : i32
    return %c0_i32, %c0_i32_0 : i32, i32
  }
  func.func @transform_4(%arg0: i32) -> (i32, i32) {
    %c0_i32 = arith.constant 0 : i32
    %c0_i32_0 = arith.constant 0 : i32
    %c0_i32_1 = arith.constant 0 : i32
    return %c0_i32, %c0_i32_0 : i32, i32
  }
  func.func @transform_5(%arg0: i32) -> (i32, i32) {
    %c0_i32 = arith.constant 0 : i32
    %c0_i32_0 = arith.constant 0 : i32
    %c0_i32_1 = arith.constant 0 : i32
    return %c0_i32, %c0_i32_0 : i32, i32
  }
  func.func @transform_6(%arg0: i32) -> (i32, i32) {
    %c0_i32 = arith.constant 0 : i32
    %c0_i32_0 = arith.constant 0 : i32
    %c0_i32_1 = arith.constant 0 : i32
    return %c0_i32, %c0_i32_0 : i32, i32
  }
  func.func @transform_7(%arg0: i32) -> i32 {
    %c0_i32 = arith.constant 0 : i32
    %c0_i32_0 = arith.constant 0 : i32
    return %c0_i32 : i32
  }
  func.func @transform_8(%arg0: i32) -> (i32, i32) {
    %c0_i32 = arith.constant 0 : i32
    %c0_i32_0 = arith.constant 0 : i32
    return %arg0, %c0_i32 : i32, i32
  }
}

</mosaic_0001>

<llo_original>
// kernel: tpu_custom_call.1
$region0: #{tpu_custom_call.1}
  #allocation0 [shape = 'u32[]', space=smem, size = 0x4, offset = 0x4, fixed_abs, tag = 'smem constant byte address 0x4 - core index']
  #allocation1 [shape = 'u32[144,128]{1,0:T(1,128)}', space=vmem, size = 0x12000, scoped, tag = 'internal scratch']
  #allocation2 [shape = 'f32[1]{0:T(128)S(6)}', space=smem, size = 0x200, scoped, tag = 'scoped memory for tpu_custom_call.1']
  %s0 = inlined_call_operand.vmem [shape: f32[512,2], index: 0, kind: input, shape index: {}]
  %s1 = inlined_call_operand.vmem [shape: f32[2,128], index: 1, kind: input, shape index: {}]
  %s2 = inlined_call_operand.vmem [shape: f32[1,128], index: 2, kind: input, shape index: {}]
  %s3 = inlined_call_operand.vmem [shape: f32[1,128], index: 3, kind: input, shape index: {}]
  %s4 = inlined_call_operand.vmem [shape: f32[128,2], index: 4, kind: input, shape index: {}]
  %s5 = inlined_call_operand.vmem [shape: f32[1,2], index: 5, kind: input, shape index: {}]
  %s6 = inlined_call_operand.vmem [shape: f32[1,2], index: 6, kind: input, shape index: {}]
  %s7 = inlined_call_operand.<no memory space> [shape: f32[1], index: 7, kind: input, shape index: {}]
  %s8 = inlined_call_operand.vmem [shape: f32[512,2], index: 8, kind: output, shape index: {}]
  %s9 = sld [smem:[#allocation0]]
  $region42: #{tpu_custom_call.1} parent=0
    _
  %s11 = ssub.s32 1, %s9
  %s12 = scalar_select 0, %s11, %s9
  %13 = sst [smem:[#allocation2]] %s7
  // Predicated region
  $region2: #{tpu_custom_call.1} parent=0 // pred_check
    _
  $region3: #{tpu_custom_call.1} parent=0 // pred_check_branch
    %15 = sbr.rel (0) target = $region5
  $region4: #{tpu_custom_call.1} parent=0 // pred_region
    _
  $region5: #{tpu_custom_call.1} parent=0 // pred_fallthru
    _
  // Predicated region
  $region6: #{tpu_custom_call.1} parent=0 // pred_check
    _
  $region7: #{tpu_custom_call.1} parent=0 // pred_check_branch
    %17 = sbr.rel (0) target = $region9
  $region8: #{tpu_custom_call.1} parent=0 // pred_region
    _
  $region9: #{tpu_custom_call.1} parent=0 // pred_fallthru
    _
  // Predicated region
  $region10: #{tpu_custom_call.1} parent=0 // pred_check
    _
  $region11: #{tpu_custom_call.1} parent=0 // pred_check_branch
    %19 = sbr.rel (0) target = $region13
  $region12: #{tpu_custom_call.1} parent=0 // pred_region
    _
  $region13: #{tpu_custom_call.1} parent=0 // pred_fallthru
    _
  // Predicated region
  $region14: #{tpu_custom_call.1} parent=0 // pred_check
    _
  $region15: #{tpu_custom_call.1} parent=0 // pred_check_branch
    %21 = sbr.rel (0) target = $region17
  $region16: #{tpu_custom_call.1} parent=0 // pred_region
    _
  $region17: #{tpu_custom_call.1} parent=0 // pred_fallthru
    _
  // Predicated region
  $region18: #{tpu_custom_call.1} parent=0 // pred_check
    _
  $region19: #{tpu_custom_call.1} parent=0 // pred_check_branch
    %23 = sbr.rel (0) target = $region21
  $region20: #{tpu_custom_call.1} parent=0 // pred_region
    _
  $region21: #{tpu_custom_call.1} parent=0 // pred_fallthru
    _
  // Predicated region
  $region22: #{tpu_custom_call.1} parent=0 // pred_check
    _
  $region23: #{tpu_custom_call.1} parent=0 // pred_check_branch
    %25 = sbr.rel (0) target = $region25
  $region24: #{tpu_custom_call.1} parent=0 // pred_region
    _
  $region25: #{tpu_custom_call.1} parent=0 // pred_fallthru
    _
  // Predicated region
  $region26: #{tpu_custom_call.1} parent=0 // pred_check
    _
  $region27: #{tpu_custom_call.1} parent=0 // pred_check_branch
    %27 = sbr.rel (0) target = $region29
  $region28: #{tpu_custom_call.1} parent=0 // pred_region
    _
  $region29: #{tpu_custom_call.1} parent=0 // pred_fallthru
    _
  // Predicated region
  $region30: #{tpu_custom_call.1} parent=0 // pred_check
    _
  $region31: #{tpu_custom_call.1} parent=0 // pred_check_branch
    %29 = sbr.rel (0) target = $region33
  $region32: #{tpu_custom_call.1} parent=0 // pred_region
    _
  $region33: #{tpu_custom_call.1} parent=0 // pred_fallthru
    _
  %v30 = vld [vmem:[%s0] sm:$0xff]
  %v31 = vld [vmem:[%s0 + $0x8] sm:$0xff]
  %v32 = vld [vmem:[%s0 + $0x10] sm:$0xff]
  %v33 = vld [vmem:[%s0 + $0x18] sm:$0xff]
  %v34 = vld [vmem:[%s0 + $0x20] sm:$0xff]
  %v35 = vld [vmem:[%s0 + $0x28] sm:$0xff]
  %v36 = vld [vmem:[%s0 + $0x30] sm:$0xff]
  %v37 = vld [vmem:[%s0 + $0x38] sm:$0xff]
  %v38 = vld [vmem:[%s0 + $0x40] sm:$0xff]
  %v39 = vld [vmem:[%s0 + $0x48] sm:$0xff]
  %v40 = vld [vmem:[%s0 + $0x50] sm:$0xff]
  %v41 = vld [vmem:[%s0 + $0x58] sm:$0xff]
  %v42 = vld [vmem:[%s0 + $0x60] sm:$0xff]
  %v43 = vld [vmem:[%s0 + $0x68] sm:$0xff]
  %v44 = vld [vmem:[%s0 + $0x70] sm:$0xff]
  %v45 = vld [vmem:[%s0 + $0x78] sm:$0xff]
  %v46 = vld [vmem:[%s0 + $0x80] sm:$0xff]
  %v47 = vld [vmem:[%s0 + $0x88] sm:$0xff]
  %v48 = vld [vmem:[%s0 + $0x90] sm:$0xff]
  %v49 = vld [vmem:[%s0 + $0x98] sm:$0xff]
  %v50 = vld [vmem:[%s0 + $0xa0] sm:$0xff]
  %v51 = vld [vmem:[%s0 + $0xa8] sm:$0xff]
  %v52 = vld [vmem:[%s0 + $0xb0] sm:$0xff]
  %v53 = vld [vmem:[%s0 + $0xb8] sm:$0xff]
  %v54 = vld [vmem:[%s0 + $0xc0] sm:$0xff]
  %v55 = vld [vmem:[%s0 + $0xc8] sm:$0xff]
  %v56 = vld [vmem:[%s0 + $0xd0] sm:$0xff]
  %v57 = vld [vmem:[%s0 + $0xd8] sm:$0xff]
  %v58 = vld [vmem:[%s0 + $0xe0] sm:$0xff]
  %v59 = vld [vmem:[%s0 + $0xe8] sm:$0xff]
  %v60 = vld [vmem:[%s0 + $0xf0] sm:$0xff]
  %v61 = vld [vmem:[%s0 + $0xf8] sm:$0xff]
  %v62 = vld [vmem:[%s0 + $0x100] sm:$0xff]
  %v63 = vld [vmem:[%s0 + $0x108] sm:$0xff]
  %v64 = vld [vmem:[%s0 + $0x110] sm:$0xff]
  %v65 = vld [vmem:[%s0 + $0x118] sm:$0xff]
  %v66 = vld [vmem:[%s0 + $0x120] sm:$0xff]
  %v67 = vld [vmem:[%s0 + $0x128] sm:$0xff]
  %v68 = vld [vmem:[%s0 + $0x130] sm:$0xff]
  %v69 = vld [vmem:[%s0 + $0x138] sm:$0xff]
  %v70 = vld [vmem:[%s0 + $0x140] sm:$0xff]
  %v71 = vld [vmem:[%s0 + $0x148] sm:$0xff]
  %v72 = vld [vmem:[%s0 + $0x150] sm:$0xff]
  %v73 = vld [vmem:[%s0 + $0x158] sm:$0xff]
  %v74 = vld [vmem:[%s0 + $0x160] sm:$0xff]
  %v75 = vld [vmem:[%s0 + $0x168] sm:$0xff]
  %v76 = vld [vmem:[%s0 + $0x170] sm:$0xff]
  %v77 = vld [vmem:[%s0 + $0x178] sm:$0xff]
  %v78 = vld [vmem:[%s0 + $0x180] sm:$0xff]
  %v79 = vld [vmem:[%s0 + $0x188] sm:$0xff]
  %v80 = vld [vmem:[%s0 + $0x190] sm:$0xff]
  %v81 = vld [vmem:[%s0 + $0x198] sm:$0xff]
  %v82 = vld [vmem:[%s0 + $0x1a0] sm:$0xff]
  %v83 = vld [vmem:[%s0 + $0x1a8] sm:$0xff]
  %v84 = vld [vmem:[%s0 + $0x1b0] sm:$0xff]
  %v85 = vld [vmem:[%s0 + $0x1b8] sm:$0xff]
  %v86 = vld [vmem:[%s0 + $0x1c0] sm:$0xff]
  %v87 = vld [vmem:[%s0 + $0x1c8] sm:$0xff]
  %v88 = vld [vmem:[%s0 + $0x1d0] sm:$0xff]
  %v89 = vld [vmem:[%s0 + $0x1d8] sm:$0xff]
  %v90 = vld [vmem:[%s0 + $0x1e0] sm:$0xff]
  %v91 = vld [vmem:[%s0 + $0x1e8] sm:$0xff]
  %v92 = vld [vmem:[%s0 + $0x1f0] sm:$0xff]
  %v93 = vld [vmem:[%s0 + $0x1f8] sm:$0xff]
  %v94 = vld [vmem:[%s1] sm:$0x3]
  %v95 = vld [vmem:[%s2] sm:$0x1]
  %v97 = vlaneseq
  %v98 = vshrl.u32 %v97, 7
  %v99 = vsub.s32 0, %v98
  %v100 = vrot.slane %v95, %v99
  %vm102 = vcmask 15360
  %v104 = vsel %vm102, %v30, 0
  %v107 = vsel %vm102, %v31, 0
  %v110 = vsel %vm102, %v32, 0
  %v113 = vsel %vm102, %v33, 0
  %v116 = vsel %vm102, %v34, 0
  %v119 = vsel %vm102, %v35, 0
  %v122 = vsel %vm102, %v36, 0
  %v125 = vsel %vm102, %v37, 0
  %v128 = vsel %vm102, %v38, 0
  %v131 = vsel %vm102, %v39, 0
  %v134 = vsel %vm102, %v40, 0
  %v137 = vsel %vm102, %v41, 0
  %v140 = vsel %vm102, %v42, 0
  %v143 = vsel %vm102, %v43, 0
  %v146 = vsel %vm102, %v44, 0
  %v149 = vsel %vm102, %v45, 0
  %v152 = vsel %vm102, %v46, 0
  %v155 = vsel %vm102, %v47, 0
  %v158 = vsel %vm102, %v48, 0
  %v161 = vsel %vm102, %v49, 0
  %v164 = vsel %vm102, %v50, 0
  %v167 = vsel %vm102, %v51, 0
  %v170 = vsel %vm102, %v52, 0
  %v173 = vsel %vm102, %v53, 0
  %v176 = vsel %vm102, %v54, 0
  %v179 = vsel %vm102, %v55, 0
  %v182 = vsel %vm102, %v56, 0
  %v185 = vsel %vm102, %v57, 0
  %v188 = vsel %vm102, %v58, 0
  %v191 = vsel %vm102, %v59, 0
  %v194 = vsel %vm102, %v60, 0
  %v197 = vsel %vm102, %v61, 0
  %v200 = vsel %vm102, %v62, 0
  %v203 = vsel %vm102, %v63, 0
  %v206 = vsel %vm102, %v64, 0
  %v209 = vsel %vm102, %v65, 0
  %v212 = vsel %vm102, %v66, 0
  %v215 = vsel %vm102, %v67, 0
  %v218 = vsel %vm102, %v68, 0
  %v221 = vsel %vm102, %v69, 0
  %v224 = vsel %vm102, %v70, 0
  %v227 = vsel %vm102, %v71, 0
  %v230 = vsel %vm102, %v72, 0
  %v233 = vsel %vm102, %v73, 0
  %v236 = vsel %vm102, %v74, 0
  %v239 = vsel %vm102, %v75, 0
  %v242 = vsel %vm102, %v76, 0
  %v245 = vsel %vm102, %v77, 0
  %v248 = vsel %vm102, %v78, 0
  %v251 = vsel %vm102, %v79, 0
  %v254 = vsel %vm102, %v80, 0
  %v257 = vsel %vm102, %v81, 0
  %v260 = vsel %vm102, %v82, 0
  %v263 = vsel %vm102, %v83, 0
  %v266 = vsel %vm102, %v84, 0
  %v269 = vsel %vm102, %v85, 0
  %v272 = vsel %vm102, %v86, 0
  %v275 = vsel %vm102, %v87, 0
  %v278 = vsel %vm102, %v88, 0
  %v281 = vsel %vm102, %v89, 0
  %v284 = vsel %vm102, %v90, 0
  %v287 = vsel %vm102, %v91, 0
  %v290 = vsel %vm102, %v92, 0
  %v293 = vsel %vm102, %v93, 0
  %vm295 = vcmask 1041408
  %v297 = vsel %vm295, %v94, 0
  %299 = vmatprep.subr.mxu0 0.0
  %300 = vmatpush1.msra.mxu0 %v297
  %301 = vmatprep.subr.mxu0 0.0
  %302 = vmatpush1.msra.mxu0 0.0
  %303 = vmatprep.subr.mxu0 0.0
  %304 = vmatpush1.msra.mxu0 0.0
  %305 = vmatprep.subr.mxu0 0.0
  %306 = vmatpush1.msra.mxu0 0.0
  %307 = vmatprep.subr.mxu0 0.0
  %308 = vmatpush1.msra.mxu0 0.0
  %309 = vmatprep.subr.mxu0 0.0
  %310 = vmatpush1.msra.mxu0 0.0
  %311 = vmatprep.subr.mxu0 0.0
  %312 = vmatpush1.msra.mxu0 0.0
  %313 = vmatprep.subr.mxu0 0.0
  %314 = vmatpush1.msra.mxu0 0.0
  %315 = vmatprep.subr.mxu0 0.0
  %316 = vmatpush1.msra.mxu0 0.0
  %317 = vmatprep.subr.mxu0 0.0
  %318 = vmatpush1.msra.mxu0 0.0
  %319 = vmatprep.subr.mxu0 0.0
  %320 = vmatpush1.msra.mxu0 0.0
  %321 = vmatprep.subr.mxu0 0.0
  %322 = vmatpush1.msra.mxu0 0.0
  %323 = vmatprep.subr.mxu0 0.0
  %324 = vmatpush1.msra.mxu0 0.0
  %325 = vmatprep.subr.mxu0 0.0
  %326 = vmatpush1.msra.mxu0 0.0
  %327 = vmatprep.subr.mxu0 0.0
  %328 = vmatpush1.msra.mxu0 0.0
  %329 = vmatprep.subr.mxu0 0.0
  %330 = vmatpush1.msra.mxu0 0.0
  %331 = vmatprep.subr.mxu0 0.0
  %332 = vmatpush1.msra.mxu0 0.0
  %333 = vmatprep.subr.mxu0 0.0
  %334 = vmatpush1.msra.mxu0 0.0
  %335 = vmatprep.subr.mxu0 0.0
  %336 = vmatpush1.msra.mxu0 0.0
  %337 = vmatprep.subr.mxu0 0.0
  %338 = vmatpush1.msra.mxu0 0.0
  %339 = vmatprep.subr.mxu0 0.0
  %340 = vmatpush1.msra.mxu0 0.0
  %341 = vmatprep.subr.mxu0 0.0
  %342 = vmatpush1.msra.mxu0 0.0
  %343 = vmatprep.subr.mxu0 0.0
  %344 = vmatpush1.msra.mxu0 0.0
  %345 = vmatprep.subr.mxu0 0.0
  %346 = vmatpush1.msra.mxu0 0.0
  %347 = vmatprep.subr.mxu0 0.0
  %348 = vmatpush1.msra.mxu0 0.0
  %349 = vmatprep.subr.mxu0 0.0
  %350 = vmatpush1.msra.mxu0 0.0
  %351 = vmatprep.subr.mxu0 0.0
  %352 = vmatpush1.msra.mxu0 0.0
  %353 = vmatprep.subr.mxu0 0.0
  %354 = vmatpush1.msra.mxu0 0.0
  %355 = vmatprep.subr.mxu0 0.0
  %356 = vmatpush1.msra.mxu0 0.0
  %357 = vmatprep.subr.mxu0 0.0
  %358 = vmatpush1.msra.mxu0 0.0
  %359 = vmatprep.subr.mxu0 0.0
  %360 = vmatpush1.msra.mxu0 0.0
  %361 = vmatprep.subr.mxu0 0.0
  %362 = vmatpush1.msra.mxu0 0.0
  %363 = vmatprep.mubr.f32.mxu0 0.0
  %364 = vmatmul.mubr.f32.gmra.mrb[0].mxu0 %v104
  %v365 = vpop.f32.mrb[0].mxu0
  %v366 = vadd.f32 %v100, %v365
  %v367 = vpop.f32.mrb[0].mxu0
  %368 = vmatprep.mubr.f32.mxu0 0.0
  %369 = vmatmul.mubr.f32.gmra.mrb[0].mxu0 %v107
  %v370 = vpop.f32.mrb[0].mxu0
  %v371 = vadd.f32 %v100, %v370
  %v372 = vpop.f32.mrb[0].mxu0
  %373 = vmatprep.mubr.f32.mxu0 0.0
  %374 = vmatmul.mubr.f32.gmra.mrb[0].mxu0 %v110
  %v375 = vpop.f32.mrb[0].mxu0
  %v376 = vadd.f32 %v100, %v375
  %v377 = vpop.f32.mrb[0].mxu0
  %378 = vmatprep.mubr.f32.mxu0 0.0
  %379 = vmatmul.mubr.f32.gmra.mrb[0].mxu0 %v113
  %v380 = vpop.f32.mrb[0].mxu0
  %v381 = vadd.f32 %v100, %v380
  %v382 = vpop.f32.mrb[0].mxu0
  %383 = vmatprep.mubr.f32.mxu0 0.0
  %384 = vmatmul.mubr.f32.gmra.mrb[0].mxu0 %v116
  %v385 = vpop.f32.mrb[0].mxu0
  %v386 = vadd.f32 %v100, %v385
  %v387 = vpop.f32.mrb[0].mxu0
  %388 = vmatprep.mubr.f32.mxu0 0.0
  %389 = vmatmul.mubr.f32.gmra.mrb[0].mxu0 %v119
  %v390 = vpop.f32.mrb[0].mxu0
  %v391 = vadd.f32 %v100, %v390
  %v392 = vpop.f32.mrb[0].mxu0
  %393 = vmatprep.mubr.f32.mxu0 0.0
  %394 = vmatmul.mubr.f32.gmra.mrb[0].mxu0 %v122
  %v395 = vpop.f32.mrb[0].mxu0
  %v396 = vadd.f32 %v100, %v395
  %v397 = vpop.f32.mrb[0].mxu0
  %398 = vmatprep.mubr.f32.mxu0 0.0
  %399 = vmatmul.mubr.f32.gmra.mrb[0].mxu0 %v125
  %v400 = vpop.f32.mrb[0].mxu0
  %v401 = vadd.f32 %v100, %v400
  %v402 = vpop.f32.mrb[0].mxu0
  %403 = vmatprep.mubr.f32.mxu0 0.0
  %404 = vmatmul.mubr.f32.gmra.mrb[0].mxu0 %v128
  %v405 = vpop.f32.mrb[0].mxu0
  %v406 = vadd.f32 %v100, %v405
  %v407 = vpop.f32.mrb[0].mxu0
  %408 = vmatprep.mubr.f32.mxu0 0.0
  %409 = vmatmul.mubr.f32.gmra.mrb[0].mxu0 %v131
  %v410 = vpop.f32.mrb[0].mxu0
  %v411 = vadd.f32 %v100, %v410
  %v412 = vpop.f32.mrb[0].mxu0
  %413 = vmatprep.mubr.f32.mxu0 0.0
  %414 = vmatmul.mubr.f32.gmra.mrb[0].mxu0 %v134
  %v415 = vpop.f32.mrb[0].mxu0
  %v416 = vadd.f32 %v100, %v415
  %v417 = vpop.f32.mrb[0].mxu0
  %418 = vmatprep.mubr.f32.mxu0 0.0
  %419 = vmatmul.mubr.f32.gmra.mrb[0].mxu0 %v137
  %v420 = vpop.f32.mrb[0].mxu0
  %v421 = vadd.f32 %v100, %v420
  %v422 = vpop.f32.mrb[0].mxu0
  %423 = vmatprep.mubr.f32.mxu0 0.0
  %424 = vmatmul.mubr.f32.gmra.mrb[0].mxu0 %v140
  %v425 = vpop.f32.mrb[0].mxu0
  %v426 = vadd.f32 %v100, %v425
  %v427 = vpop.f32.mrb[0].mxu0
  %428 = vmatprep.mubr.f32.mxu0 0.0
  %429 = vmatmul.mubr.f32.gmra.mrb[0].mxu0 %v143
  %v430 = vpop.f32.mrb[0].mxu0
  %v431 = vadd.f32 %v100, %v430
  %v432 = vpop.f32.mrb[0].mxu0
  %433 = vmatprep.mubr.f32.mxu0 0.0
  %434 = vmatmul.mubr.f32.gmra.mrb[0].mxu0 %v146
  %v435 = vpop.f32.mrb[0].mxu0
  %v436 = vadd.f32 %v100, %v435
  %v437 = vpop.f32.mrb[0].mxu0
  %438 = vmatprep.mubr.f32.mxu0 0.0
  %439 = vmatmul.mubr.f32.gmra.mrb[0].mxu0 %v149
  %v440 = vpop.f32.mrb[0].mxu0
  %v441 = vadd.f32 %v100, %v440
  %v442 = vpop.f32.mrb[0].mxu0
  %443 = vmatprep.mubr.f32.mxu0 0.0
  %444 = vmatmul.mubr.f32.gmra.mrb[0].mxu0 %v152
  %v445 = vpop.f32.mrb[0].mxu0
  %v446 = vadd.f32 %v100, %v445
  %v447 = vpop.f32.mrb[0].mxu0
  %448 = vmatprep.mubr.f32.mxu0 0.0
  %449 = vmatmul.mubr.f32.gmra.mrb[0].mxu0 %v155
  %v450 = vpop.f32.mrb[0].mxu0
  %v451 = vadd.f32 %v100, %v450
  %v452 = vpop.f32.mrb[0].mxu0
  %453 = vmatprep.mubr.f32.mxu0 0.0
  %454 = vmatmul.mubr.f32.gmra.mrb[0].mxu0 %v158
  %v455 = vpop.f32.mrb[0].mxu0
  %v456 = vadd.f32 %v100, %v455
  %v457 = vpop.f32.mrb[0].mxu0
  %458 = vmatprep.mubr.f32.mxu0 0.0
  %459 = vmatmul.mubr.f32.gmra.mrb[0].mxu0 %v161
  %v460 = vpop.f32.mrb[0].mxu0
  %v461 = vadd.f32 %v100, %v460
  %v462 = vpop.f32.mrb[0].mxu0
  %463 = vmatprep.mubr.f32.mxu0 0.0
  %464 = vmatmul.mubr.f32.gmra.mrb[0].mxu0 %v164
  %v465 = vpop.f32.mrb[0].mxu0
  %v466 = vadd.f32 %v100, %v465
  %v467 = vpop.f32.mrb[0].mxu0
  %468 = vmatprep.mubr.f32.mxu0 0.0
  %469 = vmatmul.mubr.f32.gmra.mrb[0].mxu0 %v167
  %v470 = vpop.f32.mrb[0].mxu0
  %v471 = vadd.f32 %v100, %v470
  %v472 = vpop.f32.mrb[0].mxu0
  %473 = vmatprep.mubr.f32.mxu0 0.0
  %474 = vmatmul.mubr.f32.gmra.mrb[0].mxu0 %v170
  %v475 = vpop.f32.mrb[0].mxu0
  %v476 = vadd.f32 %v100, %v475
  %v477 = vpop.f32.mrb[0].mxu0
  %478 = vmatprep.mubr.f32.mxu0 0.0
  %479 = vmatmul.mubr.f32.gmra.mrb[0].mxu0 %v173
  %v480 = vpop.f32.mrb[0].mxu0
  %v481 = vadd.f32 %v100, %v480
  %v482 = vpop.f32.mrb[0].mxu0
  %483 = vmatprep.mubr.f32.mxu0 0.0
  %484 = vmatmul.mubr.f32.gmra.mrb[0].mxu0 %v176
  %v485 = vpop.f32.mrb[0].mxu0
  %v486 = vadd.f32 %v100, %v485
  %v487 = vpop.f32.mrb[0].mxu0
  %488 = vmatprep.mubr.f32.mxu0 0.0
  %489 = vmatmul.mubr.f32.gmra.mrb[0].mxu0 %v179
  %v490 = vpop.f32.mrb[0].mxu0
  %v491 = vadd.f32 %v100, %v490
  %v492 = vpop.f32.mrb[0].mxu0
  %493 = vmatprep.mubr.f32.mxu0 0.0
  %494 = vmatmul.mubr.f32.gmra.mrb[0].mxu0 %v182
  %v495 = vpop.f32.mrb[0].mxu0
  %v496 = vadd.f32 %v100, %v495
  %v497 = vpop.f32.mrb[0].mxu0
  %498 = vmatprep.mubr.f32.mxu0 0.0
  %499 = vmatmul.mubr.f32.gmra.mrb[0].mxu0 %v185
  %v500 = vpop.f32.mrb[0].mxu0
  %v501 = vadd.f32 %v100, %v500
  %v502 = vpop.f32.mrb[0].mxu0
  %503 = vmatprep.mubr.f32.mxu0 0.0
  %504 = vmatmul.mubr.f32.gmra.mrb[0].mxu0 %v188
  %v505 = vpop.f32.mrb[0].mxu0
  %v506 = vadd.f32 %v100, %v505
  %v507 = vpop.f32.mrb[0].mxu0
  %508 = vmatprep.mubr.f32.mxu0 0.0
  %509 = vmatmul.mubr.f32.gmra.mrb[0].mxu0 %v191
  %v510 = vpop.f32.mrb[0].mxu0
  %v511 = vadd.f32 %v100, %v510
  %v512 = vpop.f32.mrb[0].mxu0
  %513 = vmatprep.mubr.f32.mxu0 0.0
  %514 = vmatmul.mubr.f32.gmra.mrb[0].mxu0 %v194
  %v515 = vpop.f32.mrb[0].mxu0
  %v516 = vadd.f32 %v100, %v515
  %v517 = vpop.f32.mrb[0].mxu0
  %518 = vmatprep.mubr.f32.mxu0 0.0
  %519 = vmatmul.mubr.f32.gmra.mrb[0].mxu0 %v197
  %v520 = vpop.f32.mrb[0].mxu0
  %v521 = vadd.f32 %v100, %v520
  %v522 = vpop.f32.mrb[0].mxu0
  %523 = vmatprep.mubr.f32.mxu0 0.0
  %524 = vmatmul.mubr.f32.gmra.mrb[0].mxu0 %v200
  %v525 = vpop.f32.mrb[0].mxu0
  %v526 = vadd.f32 %v100, %v525
  %v527 = vpop.f32.mrb[0].mxu0
  %528 = vmatprep.mubr.f32.mxu0 0.0
  %529 = vmatmul.mubr.f32.gmra.mrb[0].mxu0 %v203
  %v530 = vpop.f32.mrb[0].mxu0
  %v531 = vadd.f32 %v100, %v530
  %v532 = vpop.f32.mrb[0].mxu0
  %533 = vmatprep.mubr.f32.mxu0 0.0
  %534 = vmatmul.mubr.f32.gmra.mrb[0].mxu0 %v206
  %v535 = vpop.f32.mrb[0].mxu0
  %v536 = vadd.f32 %v100, %v535
  %v537 = vpop.f32.mrb[0].mxu0
  %538 = vmatprep.mubr.f32.mxu0 0.0
  %539 = vmatmul.mubr.f32.gmra.mrb[0].mxu0 %v209
  %v540 = vpop.f32.mrb[0].mxu0
  %v541 = vadd.f32 %v100, %v540
  %v542 = vpop.f32.mrb[0].mxu0
  %543 = vmatprep.mubr.f32.mxu0 0.0
  %544 = vmatmul.mubr.f32.gmra.mrb[0].mxu0 %v212
  %v545 = vpop.f32.mrb[0].mxu0
  %v546 = vadd.f32 %v100, %v545
  %v547 = vpop.f32.mrb[0].mxu0
  %548 = vmatprep.mubr.f32.mxu0 0.0
  %549 = vmatmul.mubr.f32.gmra.mrb[0].mxu0 %v215
  %v550 = vpop.f32.mrb[0].mxu0
  %v551 = vadd.f32 %v100, %v550
  %v552 = vpop.f32.mrb[0].mxu0
  %553 = vmatprep.mubr.f32.mxu0 0.0
  %554 = vmatmul.mubr.f32.gmra.mrb[0].mxu0 %v218
  %v555 = vpop.f32.mrb[0].mxu0
  %v556 = vadd.f32 %v100, %v555
  %v557 = vpop.f32.mrb[0].mxu0
  %558 = vmatprep.mubr.f32.mxu0 0.0
  %559 = vmatmul.mubr.f32.gmra.mrb[0].mxu0 %v221
  %v560 = vpop.f32.mrb[0].mxu0
  %v561 = vadd.f32 %v100, %v560
  %v562 = vpop.f32.mrb[0].mxu0
  %563 = vmatprep.mubr.f32.mxu0 0.0
  %564 = vmatmul.mubr.f32.gmra.mrb[0].mxu0 %v224
  %v565 = vpop.f32.mrb[0].mxu0
  %v566 = vadd.f32 %v100, %v565
  %v567 = vpop.f32.mrb[0].mxu0
  %568 = vmatprep.mubr.f32.mxu0 0.0
  %569 = vmatmul.mubr.f32.gmra.mrb[0].mxu0 %v227
  %v570 = vpop.f32.mrb[0].mxu0
  %v571 = vadd.f32 %v100, %v570
  %v572 = vpop.f32.mrb[0].mxu0
  %573 = vmatprep.mubr.f32.mxu0 0.0
  %574 = vmatmul.mubr.f32.gmra.mrb[0].mxu0 %v230
  %v575 = vpop.f32.mrb[0].mxu0
  %v576 = vadd.f32 %v100, %v575
  %v577 = vpop.f32.mrb[0].mxu0
  %578 = vmatprep.mubr.f32.mxu0 0.0
  %579 = vmatmul.mubr.f32.gmra.mrb[0].mxu0 %v233
  %v580 = vpop.f32.mrb[0].mxu0
  %v581 = vadd.f32 %v100, %v580
  %v582 = vpop.f32.mrb[0].mxu0
  %583 = vmatprep.mubr.f32.mxu0 0.0
  %584 = vmatmul.mubr.f32.gmra.mrb[0].mxu0 %v236
  %v585 = vpop.f32.mrb[0].mxu0
  %v586 = vadd.f32 %v100, %v585
  %v587 = vpop.f32.mrb[0].mxu0
  %588 = vmatprep.mubr.f32.mxu0 0.0
  %589 = vmatmul.mubr.f32.gmra.mrb[0].mxu0 %v239
  %v590 = vpop.f32.mrb[0].mxu0
  %v591 = vadd.f32 %v100, %v590
  %v592 = vpop.f32.mrb[0].mxu0
  %593 = vmatprep.mubr.f32.mxu0 0.0
  %594 = vmatmul.mubr.f32.gmra.mrb[0].mxu0 %v242
  %v595 = vpop.f32.mrb[0].mxu0
  %v596 = vadd.f32 %v100, %v595
  %v597 = vpop.f32.mrb[0].mxu0
  %598 = vmatprep.mubr.f32.mxu0 0.0
  %599 = vmatmul.mubr.f32.gmra.mrb[0].mxu0 %v245
  %v600 = vpop.f32.mrb[0].mxu0
  %v601 = vadd.f32 %v100, %v600
  %v602 = vpop.f32.mrb[0].mxu0
  %603 = vmatprep.mubr.f32.mxu0 0.0
  %604 = vmatmul.mubr.f32.gmra.mrb[0].mxu0 %v248
  %v605 = vpop.f32.mrb[0].mxu0
  %v606 = vadd.f32 %v100, %v605
  %v607 = vpop.f32.mrb[0].mxu0
  %608 = vmatprep.mubr.f32.mxu0 0.0
  %609 = vmatmul.mubr.f32.gmra.mrb[0].mxu0 %v251
  %v610 = vpop.f32.mrb[0].mxu0
  %v611 = vadd.f32 %v100, %v610
  %v612 = vpop.f32.mrb[0].mxu0
  %613 = vmatprep.mubr.f32.mxu0 0.0
  %614 = vmatmul.mubr.f32.gmra.mrb[0].mxu0 %v254
  %v615 = vpop.f32.mrb[0].mxu0
  %v616 = vadd.f32 %v100, %v615
  %v617 = vpop.f32.mrb[0].mxu0
  %618 = vmatprep.mubr.f32.mxu0 0.0
  %619 = vmatmul.mubr.f32.gmra.mrb[0].mxu0 %v257
  %v620 = vpop.f32.mrb[0].mxu0
  %v621 = vadd.f32 %v100, %v620
  %v622 = vpop.f32.mrb[0].mxu0
  %623 = vmatprep.mubr.f32.mxu0 0.0
  %624 = vmatmul.mubr.f32.gmra.mrb[0].mxu0 %v260
  %v625 = vpop.f32.mrb[0].mxu0
  %v626 = vadd.f32 %v100, %v625
  %v627 = vpop.f32.mrb[0].mxu0
  %628 = vmatprep.mubr.f32.mxu0 0.0
  %629 = vmatmul.mubr.f32.gmra.mrb[0].mxu0 %v263
  %v630 = vpop.f32.mrb[0].mxu0
  %v631 = vadd.f32 %v100, %v630
  %v632 = vpop.f32.mrb[0].mxu0
  %633 = vmatprep.mubr.f32.mxu0 0.0
  %634 = vmatmul.mubr.f32.gmra.mrb[0].mxu0 %v266
  %v635 = vpop.f32.mrb[0].mxu0
  %v636 = vadd.f32 %v100, %v635
  %v637 = vpop.f32.mrb[0].mxu0
  %638 = vmatprep.mubr.f32.mxu0 0.0
  %639 = vmatmul.mubr.f32.gmra.mrb[0].mxu0 %v269
  %v640 = vpop.f32.mrb[0].mxu0
  %v641 = vadd.f32 %v100, %v640
  %v642 = vpop.f32.mrb[0].mxu0
  %643 = vmatprep.mubr.f32.mxu0 0.0
  %644 = vmatmul.mubr.f32.gmra.mrb[0].mxu0 %v272
  %v645 = vpop.f32.mrb[0].mxu0
  %v646 = vadd.f32 %v100, %v645
  %v647 = vpop.f32.mrb[0].mxu0
  %648 = vmatprep.mubr.f32.mxu0 0.0
  %649 = vmatmul.mubr.f32.gmra.mrb[0].mxu0 %v275
  %v650 = vpop.f32.mrb[0].mxu0
  %v651 = vadd.f32 %v100, %v650
  %v652 = vpop.f32.mrb[0].mxu0
  %653 = vmatprep.mubr.f32.mxu0 0.0
  %654 = vmatmul.mubr.f32.gmra.mrb[0].mxu0 %v278
  %v655 = vpop.f32.mrb[0].mxu0
  %v656 = vadd.f32 %v100, %v655
  %v657 = vpop.f32.mrb[0].mxu0
  %658 = vmatprep.mubr.f32.mxu0 0.0
  %659 = vmatmul.mubr.f32.gmra.mrb[0].mxu0 %v281
  %v660 = vpop.f32.mrb[0].mxu0
  %v661 = vadd.f32 %v100, %v660
  %v662 = vpop.f32.mrb[0].mxu0
  %663 = vmatprep.mubr.f32.mxu0 0.0
  %664 = vmatmul.mubr.f32.gmra.mrb[0].mxu0 %v284
  %v665 = vpop.f32.mrb[0].mxu0
  %v666 = vadd.f32 %v100, %v665
  %v667 = vpop.f32.mrb[0].mxu0
  %668 = vmatprep.mubr.f32.mxu0 0.0
  %669 = vmatmul.mubr.f32.gmra.mrb[0].mxu0 %v287
  %v670 = vpop.f32.mrb[0].mxu0
  %v671 = vadd.f32 %v100, %v670
  %v672 = vpop.f32.mrb[0].mxu0
  %673 = vmatprep.mubr.f32.mxu0 0.0
  %674 = vmatmul.mubr.f32.gmra.mrb[0].mxu0 %v290
  %v675 = vpop.f32.mrb[0].mxu0
  %v676 = vadd.f32 %v100, %v675
  %v677 = vpop.f32.mrb[0].mxu0
  %678 = vmatprep.mubr.f32.mxu0 0.0
  %679 = vmatmul.mubr.f32.gmra.mrb[0].mxu0 %v293
  %v680 = vpop.f32.mrb[0].mxu0
  %v681 = vadd.f32 %v100, %v680
  %v682 = vpop.f32.mrb[0].mxu0
  %683 = vdwg.mxu0
  %v684 = vmax.f32 %v366, 0.0
  %v685 = vmax.f32 %v371, 0.0
  %v686 = vmax.f32 %v376, 0.0
  %v687 = vmax.f32 %v381, 0.0
  %v688 = vmax.f32 %v386, 0.0
  %v689 = vmax.f32 %v391, 0.0
  %v690 = vmax.f32 %v396, 0.0
  %v691 = vmax.f32 %v401, 0.0
  %v692 = vmax.f32 %v406, 0.0
  %v693 = vmax.f32 %v411, 0.0
  %v694 = vmax.f32 %v416, 0.0
  %v695 = vmax.f32 %v421, 0.0
  %v696 = vmax.f32 %v426, 0.0
  %v697 = vmax.f32 %v431, 0.0
  %v698 = vmax.f32 %v436, 0.0
  %v699 = vmax.f32 %v441, 0.0
  %v700 = vmax.f32 %v446, 0.0
  %v701 = vmax.f32 %v451, 0.0
  %v702 = vmax.f32 %v456, 0.0
  %v703 = vmax.f32 %v461, 0.0
  %v704 = vmax.f32 %v466, 0.0
  %v705 = vmax.f32 %v471, 0.0
  %v706 = vmax.f32 %v476, 0.0
  %v707 = vmax.f32 %v481, 0.0
  %v708 = vmax.f32 %v486, 0.0
  %v709 = vmax.f32 %v491, 0.0
  %v710 = vmax.f32 %v496, 0.0
  %v711 = vmax.f32 %v501, 0.0
  %v712 = vmax.f32 %v506, 0.0
  %v713 = vmax.f32 %v511, 0.0
  %v714 = vmax.f32 %v516, 0.0
  %v715 = vmax.f32 %v521, 0.0
  %v716 = vmax.f32 %v526, 0.0
  %v717 = vmax.f32 %v531, 0.0
  %v718 = vmax.f32 %v536, 0.0
  %v719 = vmax.f32 %v541, 0.0
  %v720 = vmax.f32 %v546, 0.0
  %v721 = vmax.f32 %v551, 0.0
  %v722 = vmax.f32 %v556, 0.0
  %v723 = vmax.f32 %v561, 0.0
  %v724 = vmax.f32 %v566, 0.0
  %v725 = vmax.f32 %v571, 0.0
  %v726 = vmax.f32 %v576, 0.0
  %v727 = vmax.f32 %v581, 0.0
  %v728 = vmax.f32 %v586, 0.0
  %v729 = vmax.f32 %v591, 0.0
  %v730 = vmax.f32 %v596, 0.0
  %v731 = vmax.f32 %v601, 0.0
  %v732 = vmax.f32 %v606, 0.0
  %v733 = vmax.f32 %v611, 0.0
  %v734 = vmax.f32 %v616, 0.0
  %v735 = vmax.f32 %v621, 0.0
  %v736 = vmax.f32 %v626, 0.0
  %v737 = vmax.f32 %v631, 0.0
  %v738 = vmax.f32 %v636, 0.0
  %v739 = vmax.f32 %v641, 0.0
  %v740 = vmax.f32 %v646, 0.0
  %v741 = vmax.f32 %v651, 0.0
  %v742 = vmax.f32 %v656, 0.0
  %v743 = vmax.f32 %v661, 0.0
  %v744 = vmax.f32 %v666, 0.0
  %v745 = vmax.f32 %v671, 0.0
  %v746 = vmax.f32 %v676, 0.0
  %v747 = vmax.f32 %v681, 0.0
  %v748 = vld [vmem:[%s3] sm:$0x1]
  %v750 = vlaneseq
  %v751 = vshrl.u32 %v750, 7
  %v752 = vsub.s32 0, %v751
  %v753 = vrot.slane %v748, %v752
  %v755 = vmul.f32 %v684, %v753
  %v756 = vmul.f32 %v685, %v753
  %v757 = vmul.f32 %v686, %v753
  %v758 = vmul.f32 %v687, %v753
  %v759 = vmul.f32 %v688, %v753
  %v760 = vmul.f32 %v689, %v753
  %v761 = vmul.f32 %v690, %v753
  %v762 = vmul.f32 %v691, %v753
  %v763 = vmul.f32 %v692, %v753
  %v764 = vmul.f32 %v693, %v753
  %v765 = vmul.f32 %v694, %v753
  %v766 = vmul.f32 %v695, %v753
  %v767 = vmul.f32 %v696, %v753
  %v768 = vmul.f32 %v697, %v753
  %v769 = vmul.f32 %v698, %v753
  %v770 = vmul.f32 %v699, %v753
  %v771 = vmul.f32 %v700, %v753
  %v772 = vmul.f32 %v701, %v753
  %v773 = vmul.f32 %v702, %v753
  %v774 = vmul.f32 %v703, %v753
  %v775 = vmul.f32 %v704, %v753
  %v776 = vmul.f32 %v705, %v753
  %v777 = vmul.f32 %v706, %v753
  %v778 = vmul.f32 %v707, %v753
  %v779 = vmul.f32 %v708, %v753
  %v780 = vmul.f32 %v709, %v753
  %v781 = vmul.f32 %v710, %v753
  %v782 = vmul.f32 %v711, %v753
  %v783 = vmul.f32 %v712, %v753
  %v784 = vmul.f32 %v713, %v753
  %v785 = vmul.f32 %v714, %v753
  %v786 = vmul.f32 %v715, %v753
  %v787 = vmul.f32 %v716, %v753
  %v788 = vmul.f32 %v717, %v753
  %v789 = vmul.f32 %v718, %v753
  %v790 = vmul.f32 %v719, %v753
  %v791 = vmul.f32 %v720, %v753
  %v792 = vmul.f32 %v721, %v753
  %v793 = vmul.f32 %v722, %v753
  %v794 = vmul.f32 %v723, %v753
  %v795 = vmul.f32 %v724, %v753
  %v796 = vmul.f32 %v725, %v753
  %v797 = vmul.f32 %v726, %v753
  %v798 = vmul.f32 %v727, %v753
  %v799 = vmul.f32 %v728, %v753
  %v800 = vmul.f32 %v729, %v753
  %v801 = vmul.f32 %v730, %v753
  %v802 = vmul.f32 %v731, %v753
  %v803 = vmul.f32 %v732, %v753
  %v804 = vmul.f32 %v733, %v753
  %v805 = vmul.f32 %v734, %v753
  %v806 = vmul.f32 %v735, %v753
  %v807 = vmul.f32 %v736, %v753
  %v808 = vmul.f32 %v737, %v753
  %v809 = vmul.f32 %v738, %v753
  %v810 = vmul.f32 %v739, %v753
  %v811 = vmul.f32 %v740, %v753
  %v812 = vmul.f32 %v741, %v753
  %v813 = vmul.f32 %v742, %v753
  %v814 = vmul.f32 %v743, %v753
  %v815 = vmul.f32 %v744, %v753
  %v816 = vmul.f32 %v745, %v753
  %v817 = vmul.f32 %v746, %v753
  %v818 = vmul.f32 %v747, %v753
  %v819 = vld [vmem:[%s4] sm:$0xff]
  %v820 = vld [vmem:[%s4 + $0x8] sm:$0xff]
  %v821 = vld [vmem:[%s4 + $0x10] sm:$0xff]
  %v822 = vld [vmem:[%s4 + $0x18] sm:$0xff]
  %v823 = vld [vmem:[%s4 + $0x20] sm:$0xff]
  %v824 = vld [vmem:[%s4 + $0x28] sm:$0xff]
  %v825 = vld [vmem:[%s4 + $0x30] sm:$0xff]
  %v826 = vld [vmem:[%s4 + $0x38] sm:$0xff]
  %v827 = vld [vmem:[%s4 + $0x40] sm:$0xff]
  %v828 = vld [vmem:[%s4 + $0x48] sm:$0xff]
  %v829 = vld [vmem:[%s4 + $0x50] sm:$0xff]
  %v830 = vld [vmem:[%s4 + $0x58] sm:$0xff]
  %v831 = vld [vmem:[%s4 + $0x60] sm:$0xff]
  %v832 = vld [vmem:[%s4 + $0x68] sm:$0xff]
  %v833 = vld [vmem:[%s4 + $0x70] sm:$0xff]
  %v834 = vld [vmem:[%s4 + $0x78] sm:$0xff]
  %v835 = vld [vmem:[%s5] sm:$0x1]
  %v837 = vlaneseq
  %v838 = vshrl.u32 %v837, 7
  %v839 = vsub.s32 0, %v838
  %v840 = vrot.slane %v835, %v839
  %842 = vmatprep.subr.mxu0 0.0
  %843 = vmatpush1.msra.mxu0 %v819
  %844 = vmatprep.subr.mxu0 0.0
  %845 = vmatpush1.msra.mxu0 %v820
  %846 = vmatprep.subr.mxu0 0.0
  %847 = vmatpush1.msra.mxu0 %v821
  %848 = vmatprep.subr.mxu0 0.0
  %849 = vmatpush1.msra.mxu0 %v822
  %850 = vmatprep.subr.mxu0 0.0
  %851 = vmatpush1.msra.mxu0 %v823
  %852 = vmatprep.subr.mxu0 0.0
  %853 = vmatpush1.msra.mxu0 %v824
  %854 = vmatprep.subr.mxu0 0.0
  %855 = vmatpush1.msra.mxu0 %v825
  %856 = vmatprep.subr.mxu0 0.0
  %857 = vmatpush1.msra.mxu0 %v826
  %858 = vmatprep.subr.mxu0 0.0
  %859 = vmatpush1.msra.mxu0 %v827
  %860 = vmatprep.subr.mxu0 0.0
  %861 = vmatpush1.msra.mxu0 %v828
  %862 = vmatprep.subr.mxu0 0.0
  %863 = vmatpush1.msra.mxu0 %v829
  %864 = vmatprep.subr.mxu0 0.0
  %865 = vmatpush1.msra.mxu0 %v830
  %866 = vmatprep.subr.mxu0 0.0
  %867 = vmatpush1.msra.mxu0 %v831
  %868 = vmatprep.subr.mxu0 0.0
  %869 = vmatpush1.msra.mxu0 %v832
  %870 = vmatprep.subr.mxu0 0.0
  %871 = vmatpush1.msra.mxu0 %v833
  %872 = vmatprep.subr.mxu0 0.0
  %873 = vmatpush1.msra.mxu0 %v834
  %874 = vmatprep.subr.mxu0 0.0
  %875 = vmatpush1.msra.mxu0 0.0
  %876 = vmatprep.subr.mxu0 0.0
  %877 = vmatpush1.msra.mxu0 0.0
  %878 = vmatprep.subr.mxu0 0.0
  %879 = vmatpush1.msra.mxu0 0.0
  %880 = vmatprep.subr.mxu0 0.0
  %881 = vmatpush1.msra.mxu0 0.0
  %882 = vmatprep.subr.mxu0 0.0
  %883 = vmatpush1.msra.mxu0 0.0
  %884 = vmatprep.subr.mxu0 0.0
  %885 = vmatpush1.msra.mxu0 0.0
  %886 = vmatprep.subr.mxu0 0.0
  %887 = vmatpush1.msra.mxu0 0.0
  %888 = vmatprep.subr.mxu0 0.0
  %889 = vmatpush1.msra.mxu0 0.0
  %890 = vmatprep.subr.mxu0 0.0
  %891 = vmatpush1.msra.mxu0 0.0
  %892 = vmatprep.subr.mxu0 0.0
  %893 = vmatpush1.msra.mxu0 0.0
  %894 = vmatprep.subr.mxu0 0.0
  %895 = vmatpush1.msra.mxu0 0.0
  %896 = vmatprep.subr.mxu0 0.0
  %897 = vmatpush1.msra.mxu0 0.0
  %898 = vmatprep.subr.mxu0 0.0
  %899 = vmatpush1.msra.mxu0 0.0
  %900 = vmatprep.subr.mxu0 0.0
  %901 = vmatpush1.msra.mxu0 0.0
  %902 = vmatprep.subr.mxu0 0.0
  %903 = vmatpush1.msra.mxu0 0.0
  %904 = vmatprep.subr.mxu0 0.0
  %905 = vmatpush1.msra.mxu0 0.0
  %906 = vmatprep.mubr.f32.mxu0 0.0
  %907 = vmatmul.mubr.f32.gmra.mrb[0].mxu0 %v755
  %v908 = vpop.f32.mrb[0].mxu0
  %v909 = vadd.f32 %v840, %v908
  %v910 = vpop.f32.mrb[0].mxu0
  %911 = vmatprep.mubr.f32.mxu0 0.0
  %912 = vmatmul.mubr.f32.gmra.mrb[0].mxu0 %v756
  %v913 = vpop.f32.mrb[0].mxu0
  %v914 = vadd.f32 %v840, %v913
  %v915 = vpop.f32.mrb[0].mxu0
  %916 = vmatprep.mubr.f32.mxu0 0.0
  %917 = vmatmul.mubr.f32.gmra.mrb[0].mxu0 %v757
  %v918 = vpop.f32.mrb[0].mxu0
  %v919 = vadd.f32 %v840, %v918
  %v920 = vpop.f32.mrb[0].mxu0
  %921 = vmatprep.mubr.f32.mxu0 0.0
  %922 = vmatmul.mubr.f32.gmra.mrb[0].mxu0 %v758
  %v923 = vpop.f32.mrb[0].mxu0
  %v924 = vadd.f32 %v840, %v923
  %v925 = vpop.f32.mrb[0].mxu0
  %926 = vmatprep.mubr.f32.mxu0 0.0
  %927 = vmatmul.mubr.f32.gmra.mrb[0].mxu0 %v759
  %v928 = vpop.f32.mrb[0].mxu0
  %v929 = vadd.f32 %v840, %v928
  %v930 = vpop.f32.mrb[0].mxu0
  %931 = vmatprep.mubr.f32.mxu0 0.0
  %932 = vmatmul.mubr.f32.gmra.mrb[0].mxu0 %v760
  %v933 = vpop.f32.mrb[0].mxu0
  %v934 = vadd.f32 %v840, %v933
  %v935 = vpop.f32.mrb[0].mxu0
  %936 = vmatprep.mubr.f32.mxu0 0.0
  %937 = vmatmul.mubr.f32.gmra.mrb[0].mxu0 %v761
  %v938 = vpop.f32.mrb[0].mxu0
  %v939 = vadd.f32 %v840, %v938
  %v940 = vpop.f32.mrb[0].mxu0
  %941 = vmatprep.mubr.f32.mxu0 0.0
  %942 = vmatmul.mubr.f32.gmra.mrb[0].mxu0 %v762
  %v943 = vpop.f32.mrb[0].mxu0
  %v944 = vadd.f32 %v840, %v943
  %v945 = vpop.f32.mrb[0].mxu0
  %946 = vmatprep.mubr.f32.mxu0 0.0
  %947 = vmatmul.mubr.f32.gmra.mrb[0].mxu0 %v763
  %v948 = vpop.f32.mrb[0].mxu0
  %v949 = vadd.f32 %v840, %v948
  %v950 = vpop.f32.mrb[0].mxu0
  %951 = vmatprep.mubr.f32.mxu0 0.0
  %952 = vmatmul.mubr.f32.gmra.mrb[0].mxu0 %v764
  %v953 = vpop.f32.mrb[0].mxu0
  %v954 = vadd.f32 %v840, %v953
  %v955 = vpop.f32.mrb[0].mxu0
  %956 = vmatprep.mubr.f32.mxu0 0.0
  %957 = vmatmul.mubr.f32.gmra.mrb[0].mxu0 %v765
  %v958 = vpop.f32.mrb[0].mxu0
  %v959 = vadd.f32 %v840, %v958
  %v960 = vpop.f32.mrb[0].mxu0
  %961 = vmatprep.mubr.f32.mxu0 0.0
  %962 = vmatmul.mubr.f32.gmra.mrb[0].mxu0 %v766
  %v963 = vpop.f32.mrb[0].mxu0
  %v964 = vadd.f32 %v840, %v963
  %v965 = vpop.f32.mrb[0].mxu0
  %966 = vmatprep.mubr.f32.mxu0 0.0
  %967 = vmatmul.mubr.f32.gmra.mrb[0].mxu0 %v767
  %v968 = vpop.f32.mrb[0].mxu0
  %v969 = vadd.f32 %v840, %v968
  %v970 = vpop.f32.mrb[0].mxu0
  %971 = vmatprep.mubr.f32.mxu0 0.0
  %972 = vmatmul.mubr.f32.gmra.mrb[0].mxu0 %v768
  %v973 = vpop.f32.mrb[0].mxu0
  %v974 = vadd.f32 %v840, %v973
  %v975 = vpop.f32.mrb[0].mxu0
  %976 = vmatprep.mubr.f32.mxu0 0.0
  %977 = vmatmul.mubr.f32.gmra.mrb[0].mxu0 %v769
  %v978 = vpop.f32.mrb[0].mxu0
  %v979 = vadd.f32 %v840, %v978
  %v980 = vpop.f32.mrb[0].mxu0
  %981 = vmatprep.mubr.f32.mxu0 0.0
  %982 = vmatmul.mubr.f32.gmra.mrb[0].mxu0 %v770
  %v983 = vpop.f32.mrb[0].mxu0
  %v984 = vadd.f32 %v840, %v983
  %v985 = vpop.f32.mrb[0].mxu0
  %986 = vmatprep.mubr.f32.mxu0 0.0
  %987 = vmatmul.mubr.f32.gmra.mrb[0].mxu0 %v771
  %v988 = vpop.f32.mrb[0].mxu0
  %v989 = vadd.f32 %v840, %v988
  %v990 = vpop.f32.mrb[0].mxu0
  %991 = vmatprep.mubr.f32.mxu0 0.0
  %992 = vmatmul.mubr.f32.gmra.mrb[0].mxu0 %v772
  %v993 = vpop.f32.mrb[0].mxu0
  %v994 = vadd.f32 %v840, %v993
  %v995 = vpop.f32.mrb[0].mxu0
  %996 = vmatprep.mubr.f32.mxu0 0.0
  %997 = vmatmul.mubr.f32.gmra.mrb[0].mxu0 %v773
  %v998 = vpop.f32.mrb[0].mxu0
  %v999 = vadd.f32 %v840, %v998
  %v1000 = vpop.f32.mrb[0].mxu0
  %1001 = vmatprep.mubr.f32.mxu0 0.0
  %1002 = vmatmul.mubr.f32.gmra.mrb[0].mxu0 %v774
  %v1003 = vpop.f32.mrb[0].mxu0
  %v1004 = vadd.f32 %v840, %v1003
  %v1005 = vpop.f32.mrb[0].mxu0
  %1006 = vmatprep.mubr.f32.mxu0 0.0
  %1007 = vmatmul.mubr.f32.gmra.mrb[0].mxu0 %v775
  %v1008 = vpop.f32.mrb[0].mxu0
  %v1009 = vadd.f32 %v840, %v1008
  %v1010 = vpop.f32.mrb[0].mxu0
  %1011 = vmatprep.mubr.f32.mxu0 0.0
  %1012 = vmatmul.mubr.f32.gmra.mrb[0].mxu0 %v776
  %v1013 = vpop.f32.mrb[0].mxu0
  %v1014 = vadd.f32 %v840, %v1013
  %v1015 = vpop.f32.mrb[0].mxu0
  %1016 = vmatprep.mubr.f32.mxu0 0.0
  %1017 = vmatmul.mubr.f32.gmra.mrb[0].mxu0 %v777
  %v1018 = vpop.f32.mrb[0].mxu0
  %v1019 = vadd.f32 %v840, %v1018
  %v1020 = vpop.f32.mrb[0].mxu0
  %1021 = vmatprep.mubr.f32.mxu0 0.0
  %1022 = vmatmul.mubr.f32.gmra.mrb[0].mxu0 %v778
  %v1023 = vpop.f32.mrb[0].mxu0
  %v1024 = vadd.f32 %v840, %v1023
  %v1025 = vpop.f32.mrb[0].mxu0
  %1026 = vmatprep.mubr.f32.mxu0 0.0
  %1027 = vmatmul.mubr.f32.gmra.mrb[0].mxu0 %v779
  %v1028 = vpop.f32.mrb[0].mxu0
  %v1029 = vadd.f32 %v840, %v1028
  %v1030 = vpop.f32.mrb[0].mxu0
  %1031 = vmatprep.mubr.f32.mxu0 0.0
  %1032 = vmatmul.mubr.f32.gmra.mrb[0].mxu0 %v780
  %v1033 = vpop.f32.mrb[0].mxu0
  %v1034 = vadd.f32 %v840, %v1033
  %v1035 = vpop.f32.mrb[0].mxu0
  %1036 = vmatprep.mubr.f32.mxu0 0.0
  %1037 = vmatmul.mubr.f32.gmra.mrb[0].mxu0 %v781
  %v1038 = vpop.f32.mrb[0].mxu0
  %v1039 = vadd.f32 %v840, %v1038
  %v1040 = vpop.f32.mrb[0].mxu0
  %1041 = vmatprep.mubr.f32.mxu0 0.0
  %1042 = vmatmul.mubr.f32.gmra.mrb[0].mxu0 %v782
  %v1043 = vpop.f32.mrb[0].mxu0
  %v1044 = vadd.f32 %v840, %v1043
  %v1045 = vpop.f32.mrb[0].mxu0
  %1046 = vmatprep.mubr.f32.mxu0 0.0
  %1047 = vmatmul.mubr.f32.gmra.mrb[0].mxu0 %v783
  %v1048 = vpop.f32.mrb[0].mxu0
  %v1049 = vadd.f32 %v840, %v1048
  %v1050 = vpop.f32.mrb[0].mxu0
  %1051 = vmatprep.mubr.f32.mxu0 0.0
  %1052 = vmatmul.mubr.f32.gmra.mrb[0].mxu0 %v784
  %v1053 = vpop.f32.mrb[0].mxu0
  %v1054 = vadd.f32 %v840, %v1053
  %v1055 = vpop.f32.mrb[0].mxu0
  %1056 = vmatprep.mubr.f32.mxu0 0.0
  %1057 = vmatmul.mubr.f32.gmra.mrb[0].mxu0 %v785
  %v1058 = vpop.f32.mrb[0].mxu0
  %v1059 = vadd.f32 %v840, %v1058
  %v1060 = vpop.f32.mrb[0].mxu0
  %1061 = vmatprep.mubr.f32.mxu0 0.0
  %1062 = vmatmul.mubr.f32.gmra.mrb[0].mxu0 %v786
  %v1063 = vpop.f32.mrb[0].mxu0
  %v1064 = vadd.f32 %v840, %v1063
  %v1065 = vpop.f32.mrb[0].mxu0
  %1066 = vmatprep.mubr.f32.mxu0 0.0
  %1067 = vmatmul.mubr.f32.gmra.mrb[0].mxu0 %v787
  %v1068 = vpop.f32.mrb[0].mxu0
  %v1069 = vadd.f32 %v840, %v1068
  %v1070 = vpop.f32.mrb[0].mxu0
  %1071 = vmatprep.mubr.f32.mxu0 0.0
  %1072 = vmatmul.mubr.f32.gmra.mrb[0].mxu0 %v788
  %v1073 = vpop.f32.mrb[0].mxu0
  %v1074 = vadd.f32 %v840, %v1073
  %v1075 = vpop.f32.mrb[0].mxu0
  %1076 = vmatprep.mubr.f32.mxu0 0.0
  %1077 = vmatmul.mubr.f32.gmra.mrb[0].mxu0 %v789
  %v1078 = vpop.f32.mrb[0].mxu0
  %v1079 = vadd.f32 %v840, %v1078
  %v1080 = vpop.f32.mrb[0].mxu0
  %1081 = vmatprep.mubr.f32.mxu0 0.0
  %1082 = vmatmul.mubr.f32.gmra.mrb[0].mxu0 %v790
  %v1083 = vpop.f32.mrb[0].mxu0
  %v1084 = vadd.f32 %v840, %v1083
  %v1085 = vpop.f32.mrb[0].mxu0
  %1086 = vmatprep.mubr.f32.mxu0 0.0
  %1087 = vmatmul.mubr.f32.gmra.mrb[0].mxu0 %v791
  %v1088 = vpop.f32.mrb[0].mxu0
  %v1089 = vadd.f32 %v840, %v1088
  %v1090 = vpop.f32.mrb[0].mxu0
  %1091 = vmatprep.mubr.f32.mxu0 0.0
  %1092 = vmatmul.mubr.f32.gmra.mrb[0].mxu0 %v792
  %v1093 = vpop.f32.mrb[0].mxu0
  %v1094 = vadd.f32 %v840, %v1093
  %v1095 = vpop.f32.mrb[0].mxu0
  %1096 = vmatprep.mubr.f32.mxu0 0.0
  %1097 = vmatmul.mubr.f32.gmra.mrb[0].mxu0 %v793
  %v1098 = vpop.f32.mrb[0].mxu0
  %v1099 = vadd.f32 %v840, %v1098
  %v1100 = vpop.f32.mrb[0].mxu0
  %1101 = vmatprep.mubr.f32.mxu0 0.0
  %1102 = vmatmul.mubr.f32.gmra.mrb[0].mxu0 %v794
  %v1103 = vpop.f32.mrb[0].mxu0
  %v1104 = vadd.f32 %v840, %v1103
  %v1105 = vpop.f32.mrb[0].mxu0
  %1106 = vmatprep.mubr.f32.mxu0 0.0
  %1107 = vmatmul.mubr.f32.gmra.mrb[0].mxu0 %v795
  %v1108 = vpop.f32.mrb[0].mxu0
  %v1109 = vadd.f32 %v840, %v1108
  %v1110 = vpop.f32.mrb[0].mxu0
  %1111 = vmatprep.mubr.f32.mxu0 0.0
  %1112 = vmatmul.mubr.f32.gmra.mrb[0].mxu0 %v796
  %v1113 = vpop.f32.mrb[0].mxu0
  %v1114 = vadd.f32 %v840, %v1113
  %v1115 = vpop.f32.mrb[0].mxu0
  %1116 = vmatprep.mubr.f32.mxu0 0.0
  %1117 = vmatmul.mubr.f32.gmra.mrb[0].mxu0 %v797
  %v1118 = vpop.f32.mrb[0].mxu0
  %v1119 = vadd.f32 %v840, %v1118
  %v1120 = vpop.f32.mrb[0].mxu0
  %1121 = vmatprep.mubr.f32.mxu0 0.0
  %1122 = vmatmul.mubr.f32.gmra.mrb[0].mxu0 %v798
  %v1123 = vpop.f32.mrb[0].mxu0
  %v1124 = vadd.f32 %v840, %v1123
  %v1125 = vpop.f32.mrb[0].mxu0
  %1126 = vmatprep.mubr.f32.mxu0 0.0
  %1127 = vmatmul.mubr.f32.gmra.mrb[0].mxu0 %v799
  %v1128 = vpop.f32.mrb[0].mxu0
  %v1129 = vadd.f32 %v840, %v1128
  %v1130 = vpop.f32.mrb[0].mxu0
  %1131 = vmatprep.mubr.f32.mxu0 0.0
  %1132 = vmatmul.mubr.f32.gmra.mrb[0].mxu0 %v800
  %v1133 = vpop.f32.mrb[0].mxu0
  %v1134 = vadd.f32 %v840, %v1133
  %v1135 = vpop.f32.mrb[0].mxu0
  %1136 = vmatprep.mubr.f32.mxu0 0.0
  %1137 = vmatmul.mubr.f32.gmra.mrb[0].mxu0 %v801
  %v1138 = vpop.f32.mrb[0].mxu0
  %v1139 = vadd.f32 %v840, %v1138
  %v1140 = vpop.f32.mrb[0].mxu0
  %1141 = vmatprep.mubr.f32.mxu0 0.0
  %1142 = vmatmul.mubr.f32.gmra.mrb[0].mxu0 %v802
  %v1143 = vpop.f32.mrb[0].mxu0
  %v1144 = vadd.f32 %v840, %v1143
  %v1145 = vpop.f32.mrb[0].mxu0
  %1146 = vmatprep.mubr.f32.mxu0 0.0
  %1147 = vmatmul.mubr.f32.gmra.mrb[0].mxu0 %v803
  %v1148 = vpop.f32.mrb[0].mxu0
  %v1149 = vadd.f32 %v840, %v1148
  %v1150 = vpop.f32.mrb[0].mxu0
  %1151 = vmatprep.mubr.f32.mxu0 0.0
  %1152 = vmatmul.mubr.f32.gmra.mrb[0].mxu0 %v804
  %v1153 = vpop.f32.mrb[0].mxu0
  %v1154 = vadd.f32 %v840, %v1153
  %v1155 = vpop.f32.mrb[0].mxu0
  %1156 = vmatprep.mubr.f32.mxu0 0.0
  %1157 = vmatmul.mubr.f32.gmra.mrb[0].mxu0 %v805
  %v1158 = vpop.f32.mrb[0].mxu0
  %v1159 = vadd.f32 %v840, %v1158
  %v1160 = vpop.f32.mrb[0].mxu0
  %1161 = vmatprep.mubr.f32.mxu0 0.0
  %1162 = vmatmul.mubr.f32.gmra.mrb[0].mxu0 %v806
  %v1163 = vpop.f32.mrb[0].mxu0
  %v1164 = vadd.f32 %v840, %v1163
  %v1165 = vpop.f32.mrb[0].mxu0
  %1166 = vmatprep.mubr.f32.mxu0 0.0
  %1167 = vmatmul.mubr.f32.gmra.mrb[0].mxu0 %v807
  %v1168 = vpop.f32.mrb[0].mxu0
  %v1169 = vadd.f32 %v840, %v1168
  %v1170 = vpop.f32.mrb[0].mxu0
  %1171 = vmatprep.mubr.f32.mxu0 0.0
  %1172 = vmatmul.mubr.f32.gmra.mrb[0].mxu0 %v808
  %v1173 = vpop.f32.mrb[0].mxu0
  %v1174 = vadd.f32 %v840, %v1173
  %v1175 = vpop.f32.mrb[0].mxu0
  %1176 = vmatprep.mubr.f32.mxu0 0.0
  %1177 = vmatmul.mubr.f32.gmra.mrb[0].mxu0 %v809
  %v1178 = vpop.f32.mrb[0].mxu0
  %v1179 = vadd.f32 %v840, %v1178
  %v1180 = vpop.f32.mrb[0].mxu0
  %1181 = vmatprep.mubr.f32.mxu0 0.0
  %1182 = vmatmul.mubr.f32.gmra.mrb[0].mxu0 %v810
  %v1183 = vpop.f32.mrb[0].mxu0
  %v1184 = vadd.f32 %v840, %v1183
  %v1185 = vpop.f32.mrb[0].mxu0
  %1186 = vmatprep.mubr.f32.mxu0 0.0
  %1187 = vmatmul.mubr.f32.gmra.mrb[0].mxu0 %v811
  %v1188 = vpop.f32.mrb[0].mxu0
  %v1189 = vadd.f32 %v840, %v1188
  %v1190 = vpop.f32.mrb[0].mxu0
  %1191 = vmatprep.mubr.f32.mxu0 0.0
  %1192 = vmatmul.mubr.f32.gmra.mrb[0].mxu0 %v812
  %v1193 = vpop.f32.mrb[0].mxu0
  %v1194 = vadd.f32 %v840, %v1193
  %v1195 = vpop.f32.mrb[0].mxu0
  %1196 = vmatprep.mubr.f32.mxu0 0.0
  %1197 = vmatmul.mubr.f32.gmra.mrb[0].mxu0 %v813
  %v1198 = vpop.f32.mrb[0].mxu0
  %v1199 = vadd.f32 %v840, %v1198
  %v1200 = vpop.f32.mrb[0].mxu0
  %1201 = vmatprep.mubr.f32.mxu0 0.0
  %1202 = vmatmul.mubr.f32.gmra.mrb[0].mxu0 %v814
  %v1203 = vpop.f32.mrb[0].mxu0
  %v1204 = vadd.f32 %v840, %v1203
  %v1205 = vpop.f32.mrb[0].mxu0
  %1206 = vmatprep.mubr.f32.mxu0 0.0
  %1207 = vmatmul.mubr.f32.gmra.mrb[0].mxu0 %v815
  %v1208 = vpop.f32.mrb[0].mxu0
  %v1209 = vadd.f32 %v840, %v1208
  %v1210 = vpop.f32.mrb[0].mxu0
  %1211 = vmatprep.mubr.f32.mxu0 0.0
  %1212 = vmatmul.mubr.f32.gmra.mrb[0].mxu0 %v816
  %v1213 = vpop.f32.mrb[0].mxu0
  %v1214 = vadd.f32 %v840, %v1213
  %v1215 = vpop.f32.mrb[0].mxu0
  %1216 = vmatprep.mubr.f32.mxu0 0.0
  %1217 = vmatmul.mubr.f32.gmra.mrb[0].mxu0 %v817
  %v1218 = vpop.f32.mrb[0].mxu0
  %v1219 = vadd.f32 %v840, %v1218
  %v1220 = vpop.f32.mrb[0].mxu0
  %1221 = vmatprep.mubr.f32.mxu0 0.0
  %1222 = vmatmul.mubr.f32.gmra.mrb[0].mxu0 %v818
  %v1223 = vpop.f32.mrb[0].mxu0
  %v1224 = vadd.f32 %v840, %v1223
  %v1225 = vpop.f32.mrb[0].mxu0
  %1226 = vdwg.mxu0
  %v1227 = vld [vmem:[%s6] sm:$0x1]
  %v1229 = vlaneseq
  %v1230 = vshrl.u32 %v1229, 7
  %v1231 = vsub.s32 0, %v1230
  %v1232 = vrot.slane %v1227, %v1231
  %v1234 = vmul.f32 %v909, %v1232
  %v1235 = vmul.f32 %v914, %v1232
  %v1236 = vmul.f32 %v919, %v1232
  %v1237 = vmul.f32 %v924, %v1232
  %v1238 = vmul.f32 %v929, %v1232
  %v1239 = vmul.f32 %v934, %v1232
  %v1240 = vmul.f32 %v939, %v1232
  %v1241 = vmul.f32 %v944, %v1232
  %v1242 = vmul.f32 %v949, %v1232
  %v1243 = vmul.f32 %v954, %v1232
  %v1244 = vmul.f32 %v959, %v1232
  %v1245 = vmul.f32 %v964, %v1232
  %v1246 = vmul.f32 %v969, %v1232
  %v1247 = vmul.f32 %v974, %v1232
  %v1248 = vmul.f32 %v979, %v1232
  %v1249 = vmul.f32 %v984, %v1232
  %v1250 = vmul.f32 %v989, %v1232
  %v1251 = vmul.f32 %v994, %v1232
  %v1252 = vmul.f32 %v999, %v1232
  %v1253 = vmul.f32 %v1004, %v1232
  %v1254 = vmul.f32 %v1009, %v1232
  %v1255 = vmul.f32 %v1014, %v1232
  %v1256 = vmul.f32 %v1019, %v1232
  %v1257 = vmul.f32 %v1024, %v1232
  %v1258 = vmul.f32 %v1029, %v1232
  %v1259 = vmul.f32 %v1034, %v1232
  %v1260 = vmul.f32 %v1039, %v1232
  %v1261 = vmul.f32 %v1044, %v1232
  %v1262 = vmul.f32 %v1049, %v1232
  %v1263 = vmul.f32 %v1054, %v1232
  %v1264 = vmul.f32 %v1059, %v1232
  %v1265 = vmul.f32 %v1064, %v1232
  %v1266 = vmul.f32 %v1069, %v1232
  %v1267 = vmul.f32 %v1074, %v1232
  %v1268 = vmul.f32 %v1079, %v1232
  %v1269 = vmul.f32 %v1084, %v1232
  %v1270 = vmul.f32 %v1089, %v1232
  %v1271 = vmul.f32 %v1094, %v1232
  %v1272 = vmul.f32 %v1099, %v1232
  %v1273 = vmul.f32 %v1104, %v1232
  %v1274 = vmul.f32 %v1109, %v1232
  %v1275 = vmul.f32 %v1114, %v1232
  %v1276 = vmul.f32 %v1119, %v1232
  %v1277 = vmul.f32 %v1124, %v1232
  %v1278 = vmul.f32 %v1129, %v1232
  %v1279 = vmul.f32 %v1134, %v1232
  %v1280 = vmul.f32 %v1139, %v1232
  %v1281 = vmul.f32 %v1144, %v1232
  %v1282 = vmul.f32 %v1149, %v1232
  %v1283 = vmul.f32 %v1154, %v1232
  %v1284 = vmul.f32 %v1159, %v1232
  %v1285 = vmul.f32 %v1164, %v1232
  %v1286 = vmul.f32 %v1169, %v1232
  %v1287 = vmul.f32 %v1174, %v1232
  %v1288 = vmul.f32 %v1179, %v1232
  %v1289 = vmul.f32 %v1184, %v1232
  %v1290 = vmul.f32 %v1189, %v1232
  %v1291 = vmul.f32 %v1194, %v1232
  %v1292 = vmul.f32 %v1199, %v1232
  %v1293 = vmul.f32 %v1204, %v1232
  %v1294 = vmul.f32 %v1209, %v1232
  %v1295 = vmul.f32 %v1214, %v1232
  %v1296 = vmul.f32 %v1219, %v1232
  %v1297 = vmul.f32 %v1224, %v1232
  %s1298 = sld [smem:[#allocation2]]
  %s1299 = smul.f32 %s1298, %s1298
  %v1300 = vstv %s1299
  %v1301 = vmul.f32 %v1234, %v1300
  %v1302 = vmul.f32 %v1235, %v1300
  %v1303 = vmul.f32 %v1236, %v1300
  %v1304 = vmul.f32 %v1237, %v1300
  %v1305 = vmul.f32 %v1238, %v1300
  %v1306 = vmul.f32 %v1239, %v1300
  %v1307 = vmul.f32 %v1240, %v1300
  %v1308 = vmul.f32 %v1241, %v1300
  %v1309 = vmul.f32 %v1242, %v1300
  %v1310 = vmul.f32 %v1243, %v1300
  %v1311 = vmul.f32 %v1244, %v1300
  %v1312 = vmul.f32 %v1245, %v1300
  %v1313 = vmul.f32 %v1246, %v1300
  %v1314 = vmul.f32 %v1247, %v1300
  %v1315 = vmul.f32 %v1248, %v1300
  %v1316 = vmul.f32 %v1249, %v1300
  %v1317 = vmul.f32 %v1250, %v1300
  %v1318 = vmul.f32 %v1251, %v1300
  %v1319 = vmul.f32 %v1252, %v1300
  %v1320 = vmul.f32 %v1253, %v1300
  %v1321 = vmul.f32 %v1254, %v1300
  %v1322 = vmul.f32 %v1255, %v1300
  %v1323 = vmul.f32 %v1256, %v1300
  %v1324 = vmul.f32 %v1257, %v1300
  %v1325 = vmul.f32 %v1258, %v1300
  %v1326 = vmul.f32 %v1259, %v1300
  %v1327 = vmul.f32 %v1260, %v1300
  %v1328 = vmul.f32 %v1261, %v1300
  %v1329 = vmul.f32 %v1262, %v1300
  %v1330 = vmul.f32 %v1263, %v1300
  %v1331 = vmul.f32 %v1264, %v1300
  %v1332 = vmul.f32 %v1265, %v1300
  %v1333 = vmul.f32 %v1266, %v1300
  %v1334 = vmul.f32 %v1267, %v1300
  %v1335 = vmul.f32 %v1268, %v1300
  %v1336 = vmul.f32 %v1269, %v1300
  %v1337 = vmul.f32 %v1270, %v1300
  %v1338 = vmul.f32 %v1271, %v1300
  %v1339 = vmul.f32 %v1272, %v1300
  %v1340 = vmul.f32 %v1273, %v1300
  %v1341 = vmul.f32 %v1274, %v1300
  %v1342 = vmul.f32 %v1275, %v1300
  %v1343 = vmul.f32 %v1276, %v1300
  %v1344 = vmul.f32 %v1277, %v1300
  %v1345 = vmul.f32 %v1278, %v1300
  %v1346 = vmul.f32 %v1279, %v1300
  %v1347 = vmul.f32 %v1280, %v1300
  %v1348 = vmul.f32 %v1281, %v1300
  %v1349 = vmul.f32 %v1282, %v1300
  %v1350 = vmul.f32 %v1283, %v1300
  %v1351 = vmul.f32 %v1284, %v1300
  %v1352 = vmul.f32 %v1285, %v1300
  %v1353 = vmul.f32 %v1286, %v1300
  %v1354 = vmul.f32 %v1287, %v1300
  %v1355 = vmul.f32 %v1288, %v1300
  %v1356 = vmul.f32 %v1289, %v1300
  %v1357 = vmul.f32 %v1290, %v1300
  %v1358 = vmul.f32 %v1291, %v1300
  %v1359 = vmul.f32 %v1292, %v1300
  %v1360 = vmul.f32 %v1293, %v1300
  %v1361 = vmul.f32 %v1294, %v1300
  %v1362 = vmul.f32 %v1295, %v1300
  %v1363 = vmul.f32 %v1296, %v1300
  %v1364 = vmul.f32 %v1297, %v1300
  %1365 = vst.msk [vmem:[%s8] sm:$0xff] %vm102, %v1301
  %1366 = vst.msk [vmem:[%s8 + $0x8] sm:$0xff] %vm102, %v1302
  %1367 = vst.msk [vmem:[%s8 + $0x10] sm:$0xff] %vm102, %v1303
  %1368 = vst.msk [vmem:[%s8 + $0x18] sm:$0xff] %vm102, %v1304
  %1369 = vst.msk [vmem:[%s8 + $0x20] sm:$0xff] %vm102, %v1305
  %1370 = vst.msk [vmem:[%s8 + $0x28] sm:$0xff] %vm102, %v1306
  %1371 = vst.msk [vmem:[%s8 + $0x30] sm:$0xff] %vm102, %v1307
  %1372 = vst.msk [vmem:[%s8 + $0x38] sm:$0xff] %vm102, %v1308
  %1373 = vst.msk [vmem:[%s8 + $0x40] sm:$0xff] %vm102, %v1309
  %1374 = vst.msk [vmem:[%s8 + $0x48] sm:$0xff] %vm102, %v1310
  %1375 = vst.msk [vmem:[%s8 + $0x50] sm:$0xff] %vm102, %v1311
  %1376 = vst.msk [vmem:[%s8 + $0x58] sm:$0xff] %vm102, %v1312
  %1377 = vst.msk [vmem:[%s8 + $0x60] sm:$0xff] %vm102, %v1313
  %1378 = vst.msk [vmem:[%s8 + $0x68] sm:$0xff] %vm102, %v1314
  %1379 = vst.msk [vmem:[%s8 + $0x70] sm:$0xff] %vm102, %v1315
  %1380 = vst.msk [vmem:[%s8 + $0x78] sm:$0xff] %vm102, %v1316
  %1381 = vst.msk [vmem:[%s8 + $0x80] sm:$0xff] %vm102, %v1317
  %1382 = vst.msk [vmem:[%s8 + $0x88] sm:$0xff] %vm102, %v1318
  %1383 = vst.msk [vmem:[%s8 + $0x90] sm:$0xff] %vm102, %v1319
  %1384 = vst.msk [vmem:[%s8 + $0x98] sm:$0xff] %vm102, %v1320
  %1385 = vst.msk [vmem:[%s8 + $0xa0] sm:$0xff] %vm102, %v1321
  %1386 = vst.msk [vmem:[%s8 + $0xa8] sm:$0xff] %vm102, %v1322
  %1387 = vst.msk [vmem:[%s8 + $0xb0] sm:$0xff] %vm102, %v1323
  %1388 = vst.msk [vmem:[%s8 + $0xb8] sm:$0xff] %vm102, %v1324
  %1389 = vst.msk [vmem:[%s8 + $0xc0] sm:$0xff] %vm102, %v1325
  %1390 = vst.msk [vmem:[%s8 + $0xc8] sm:$0xff] %vm102, %v1326
  %1391 = vst.msk [vmem:[%s8 + $0xd0] sm:$0xff] %vm102, %v1327
  %1392 = vst.msk [vmem:[%s8 + $0xd8] sm:$0xff] %vm102, %v1328
  %1393 = vst.msk [vmem:[%s8 + $0xe0] sm:$0xff] %vm102, %v1329
  %1394 = vst.msk [vmem:[%s8 + $0xe8] sm:$0xff] %vm102, %v1330
  %1395 = vst.msk [vmem:[%s8 + $0xf0] sm:$0xff] %vm102, %v1331
  %1396 = vst.msk [vmem:[%s8 + $0xf8] sm:$0xff] %vm102, %v1332
  %1397 = vst.msk [vmem:[%s8 + $0x100] sm:$0xff] %vm102, %v1333
  %1398 = vst.msk [vmem:[%s8 + $0x108] sm:$0xff] %vm102, %v1334
  %1399 = vst.msk [vmem:[%s8 + $0x110] sm:$0xff] %vm102, %v1335
  %1400 = vst.msk [vmem:[%s8 + $0x118] sm:$0xff] %vm102, %v1336
  %1401 = vst.msk [vmem:[%s8 + $0x120] sm:$0xff] %vm102, %v1337
  %1402 = vst.msk [vmem:[%s8 + $0x128] sm:$0xff] %vm102, %v1338
  %1403 = vst.msk [vmem:[%s8 + $0x130] sm:$0xff] %vm102, %v1339
  %1404 = vst.msk [vmem:[%s8 + $0x138] sm:$0xff] %vm102, %v1340
  %1405 = vst.msk [vmem:[%s8 + $0x140] sm:$0xff] %vm102, %v1341
  %1406 = vst.msk [vmem:[%s8 + $0x148] sm:$0xff] %vm102, %v1342
  %1407 = vst.msk [vmem:[%s8 + $0x150] sm:$0xff] %vm102, %v1343
  %1408 = vst.msk [vmem:[%s8 + $0x158] sm:$0xff] %vm102, %v1344
  %1409 = vst.msk [vmem:[%s8 + $0x160] sm:$0xff] %vm102, %v1345
  %1410 = vst.msk [vmem:[%s8 + $0x168] sm:$0xff] %vm102, %v1346
  %1411 = vst.msk [vmem:[%s8 + $0x170] sm:$0xff] %vm102, %v1347
  %1412 = vst.msk [vmem:[%s8 + $0x178] sm:$0xff] %vm102, %v1348
  %1413 = vst.msk [vmem:[%s8 + $0x180] sm:$0xff] %vm102, %v1349
  %1414 = vst.msk [vmem:[%s8 + $0x188] sm:$0xff] %vm102, %v1350
  %1415 = vst.msk [vmem:[%s8 + $0x190] sm:$0xff] %vm102, %v1351
  %1416 = vst.msk [vmem:[%s8 + $0x198] sm:$0xff] %vm102, %v1352
  %1417 = vst.msk [vmem:[%s8 + $0x1a0] sm:$0xff] %vm102, %v1353
  %1418 = vst.msk [vmem:[%s8 + $0x1a8] sm:$0xff] %vm102, %v1354
  %1419 = vst.msk [vmem:[%s8 + $0x1b0] sm:$0xff] %vm102, %v1355
  %1420 = vst.msk [vmem:[%s8 + $0x1b8] sm:$0xff] %vm102, %v1356
  %1421 = vst.msk [vmem:[%s8 + $0x1c0] sm:$0xff] %vm102, %v1357
  %1422 = vst.msk [vmem:[%s8 + $0x1c8] sm:$0xff] %vm102, %v1358
  %1423 = vst.msk [vmem:[%s8 + $0x1d0] sm:$0xff] %vm102, %v1359
  %1424 = vst.msk [vmem:[%s8 + $0x1d8] sm:$0xff] %vm102, %v1360
  %1425 = vst.msk [vmem:[%s8 + $0x1e0] sm:$0xff] %vm102, %v1361
  %1426 = vst.msk [vmem:[%s8 + $0x1e8] sm:$0xff] %vm102, %v1362
  %1427 = vst.msk [vmem:[%s8 + $0x1f0] sm:$0xff] %vm102, %v1363
  %1428 = vst.msk [vmem:[%s8 + $0x1f8] sm:$0xff] %vm102, %v1364
  // Predicated region
  $region34: #{tpu_custom_call.1} parent=0 // pred_check
    _
  $region35: #{tpu_custom_call.1} parent=0 // pred_check_branch
    %1430 = sbr.rel (0) target = $region37
  $region36: #{tpu_custom_call.1} parent=0 // pred_region
    _
  $region37: #{tpu_custom_call.1} parent=0 // pred_fallthru
    _
  // Predicated region
  $region38: #{tpu_custom_call.1} parent=0 // pred_check
    _
  $region39: #{tpu_custom_call.1} parent=0 // pred_check_branch
    %1432 = sbr.rel (0) target = $region41
  $region40: #{tpu_custom_call.1} parent=0 // pred_region
    _
  $region41: #{tpu_custom_call.1} parent=0 // pred_fallthru
    _

</llo_original>
